<compile_context>
chip_gen: v6e
topology: v6e:2x2x1
jax: 0.10.0
libtpu: 0.0.40
codegen_flags: <defaults>
</compile_context>

<pallas_src>
import jax
import jax.numpy as jnp
from jax.experimental import pallas as pl
from jax.experimental.pallas import tpu as pltpu


def _round_up(x, m):
    return ((x + m - 1) // m) * m


def _leaky_relu(x, negative_slope=0.01):
    return jnp.where(x > 0, x, negative_slope * x)


def mlp_kernel(x_ref,
               w1_ref, b1_ref,
               w2_ref, b2_ref,
               w3_ref, b3_ref,
               w4_ref, b4_ref,
               w5_ref, b5_ref,
               o_ref):
    # One batch tile of the fused 5-layer MLP. x arrives f32 and is cast to bf16
    # on the VPU (free: kernel is DMA-bound); all matmuls are bf16 on the MXU with
    # f32 accumulation. Dropout: identity (eval mode).
    xb = x_ref[...].astype(jnp.bfloat16)

    h = jnp.dot(xb, w1_ref[...], preferred_element_type=jnp.float32) + b1_ref[...]
    h = _leaky_relu(h)

    h = jnp.dot(h.astype(jnp.bfloat16), w2_ref[...], preferred_element_type=jnp.float32) + b2_ref[...]
    h = _leaky_relu(h)

    h = jnp.dot(h.astype(jnp.bfloat16), w3_ref[...], preferred_element_type=jnp.float32) + b3_ref[...]
    h = _leaky_relu(h)

    h = jnp.dot(h.astype(jnp.bfloat16), w4_ref[...], preferred_element_type=jnp.float32) + b4_ref[...]
    h = _leaky_relu(h)

    logits = jnp.dot(h.astype(jnp.bfloat16), w5_ref[...], preferred_element_type=jnp.float32) + b5_ref[...]
    o_ref[...] = jax.nn.sigmoid(logits)


def mnist_classifier_forward(x, params, *, tile_b=512):
    """x: (B, 1, 28, 28) or (B, 784). Returns (B, n_classes) sigmoid outputs (f32)."""
    (w1, b1), (w2, b2), (w3, b3), (w4, b4), (w5, b5) = params
    n_classes = w5.shape[1]

    B = x.shape[0]
    x2d = x.reshape(B, -1).astype(jnp.float32)      # == x.view(batch_size, -1)
    n_in = x2d.shape[1]                              # 784; block last-dim == full dim

    # Lane-align only the tiny output dim (10 -> 128) for unmasked stores.
    n_pad = _round_up(max(n_classes, 128), 128)

    # Batch tile: multiple of 8 sublanes; large tiles amortize per-step overhead.
    tile_b = max(8, min(_round_up(tile_b, 8), _round_up(B, 8)))
    b_pad = _round_up(B, tile_b)

    # x streamed as-is (f32); only pad the batch remainder (usually zero rows).
    xp = x2d if b_pad == B else jnp.pad(x2d, ((0, b_pad - B), (0, 0)))

    # One-time prep of the tiny, VMEM-resident operands.
    w5p = jnp.pad(w5, ((0, 0), (0, n_pad - n_classes))).astype(jnp.bfloat16)
    b5p = jnp.pad(b5, ((0, 0), (0, n_pad - n_classes))).astype(jnp.float32)

    layers = [
        (w1.astype(jnp.bfloat16), b1.astype(jnp.float32)),
        (w2.astype(jnp.bfloat16), b2.astype(jnp.float32)),
        (w3.astype(jnp.bfloat16), b3.astype(jnp.float32)),
        (w4.astype(jnp.bfloat16), b4.astype(jnp.float32)),
        (w5p, b5p),
    ]

    grid = (b_pad // tile_b,)

    x_spec = pl.BlockSpec((tile_b, n_in), lambda i: (i, 0))
    out_spec = pl.BlockSpec((tile_b, n_pad), lambda i: (i, 0))

    def resident(arr):
        # Full-array block with a constant index_map: DMA'd once, stays in VMEM.
        return pl.BlockSpec(arr.shape, lambda i: (0,) * arr.ndim)

    operands = [xp]
    in_specs = [x_spec]
    for w, b in layers:
        operands += [w, b]
        in_specs += [resident(w), resident(b)]

    weight_bytes = sum(int(w.size) * 2 + int(b.size) * 4 for w, b in layers)
    cost = pl.CostEstimate(
        flops=2 * b_pad * (n_in * 128 + 128 * 64 + 64 * 32 + 32 * 16 + 16 * n_pad),
        transcendentals=b_pad * n_pad,  # final sigmoid
        bytes_accessed=b_pad * n_in * 4 + b_pad * n_pad * 4 + weight_bytes,
    )

    out = pl.pallas_call(
        mlp_kernel,
        out_shape=jax.ShapeDtypeStruct((b_pad, n_pad), jnp.float32),
        grid=grid,
        in_specs=in_specs,
        out_specs=out_spec,
        compiler_params=pltpu.CompilerParams(
            dimension_semantics=("parallel",),   # shards batch tiles across TCs on v7x
            vmem_limit_bytes=32 << 20,           # tiles + resident weights << 32 MiB
        ),
        cost_estimate=cost,
    )(*operands)

    # Slice off batch padding and the lane-padded output columns.
    return out[:B, :n_classes]


def init_params(key, n_inputs=784, n_classes=10):
    sizes = [n_inputs, 128, 64, 32, 16, n_classes]
    params = []
    for i in range(len(sizes) - 1):
        fan_in, fan_out = sizes[i], sizes[i + 1]
        key, wk, bk = jax.random.split(key, 3)
        bound = 1.0 / jnp.sqrt(fan_in)
        # PyTorch nn.Linear default init: U(-1/sqrt(fan_in), 1/sqrt(fan_in))
        w = jax.random.uniform(wk, (fan_in, fan_out), jnp.float32, -bound, bound)
        b = jax.random.uniform(bk, (1, fan_out), jnp.float32, -bound, bound)
        params.append((w, b))
    return params


def reference_forward(x, params):
    # Plain-JAX reference with the same bf16-input / f32-accumulate arithmetic.
    h = x.reshape(x.shape[0], -1).astype(jnp.float32)
    for i, (w, b) in enumerate(params):
        h = jnp.dot(h.astype(jnp.bfloat16), w.astype(jnp.bfloat16),
                    preferred_element_type=jnp.float32) + b
        if i < len(params) - 1:
            h = _leaky_relu(h)   # dropout: identity (eval mode)
        else:
            h = jax.nn.sigmoid(h)
    return h


if __name__ == "__main__":
    key = jax.random.PRNGKey(0)
    pkey, xkey = jax.random.split(key)

    params = init_params(pkey)
    # MNIST-like input: batch=8, NCHW (8, 1, 28, 28) -> flattened to (8, 784)
    x = jax.random.normal(xkey, (8, 1, 28, 28), dtype=jnp.float32)

    fwd = jax.jit(mnist_classifier_forward)
    out = jax.block_until_ready(fwd(x, params))
    ref = reference_forward(x, params)

    assert out.shape == (8, 10), out.shape
    assert jnp.allclose(out, ref, atol=2e-3, rtol=2e-3), float(jnp.max(jnp.abs(out - ref)))

    # TODO(synk): train-mode Dropout(0.1) (RNG mask) and predict()'s multinomial
    # sampling are intentionally not implemented (inference forward only).
    print("KERNEL_OK")
</pallas_src>

<mosaic_0001>
module attributes {stable_mosaic.version = 11 : i64} {
  func.func @mlp_kernel(%arg0: i32, %arg1: memref<8x784xf32, #tpu.memory_space<vmem>>, %arg2: memref<784x128xbf16, #tpu.memory_space<vmem>>, %arg3: memref<1x128xf32, #tpu.memory_space<vmem>>, %arg4: memref<128x64xbf16, #tpu.memory_space<vmem>>, %arg5: memref<1x64xf32, #tpu.memory_space<vmem>>, %arg6: memref<64x32xbf16, #tpu.memory_space<vmem>>, %arg7: memref<1x32xf32, #tpu.memory_space<vmem>>, %arg8: memref<32x16xbf16, #tpu.memory_space<vmem>>, %arg9: memref<1x16xf32, #tpu.memory_space<vmem>>, %arg10: memref<16x128xbf16, #tpu.memory_space<vmem>>, %arg11: memref<1x128xf32, #tpu.memory_space<vmem>>, %arg12: memref<8x128xf32, #tpu.memory_space<vmem>>) attributes {dimension_semantics = [#tpu.dimension_semantics<parallel>], iteration_bounds = array<i64: 1>, scalar_prefetch = 0 : i64, scratch_operands = 0 : i64, tpu.core_type = #tpu.core_type<tc>, window_params = [{transform_indices = @transform_0, window_bounds = array<i64: 8, 784>}, {pipeline_mode = #tpu.pipeline_mode<synchronous>, transform_indices = @transform_1, window_bounds = array<i64: 784, 128>}, {pipeline_mode = #tpu.pipeline_mode<synchronous>, transform_indices = @transform_2, window_bounds = array<i64: 1, 128>}, {pipeline_mode = #tpu.pipeline_mode<synchronous>, transform_indices = @transform_3, window_bounds = array<i64: 128, 64>}, {pipeline_mode = #tpu.pipeline_mode<synchronous>, transform_indices = @transform_4, window_bounds = array<i64: 1, 64>}, {pipeline_mode = #tpu.pipeline_mode<synchronous>, transform_indices = @transform_5, window_bounds = array<i64: 64, 32>}, {pipeline_mode = #tpu.pipeline_mode<synchronous>, transform_indices = @transform_6, window_bounds = array<i64: 1, 32>}, {pipeline_mode = #tpu.pipeline_mode<synchronous>, transform_indices = @transform_7, window_bounds = array<i64: 32, 16>}, {pipeline_mode = #tpu.pipeline_mode<synchronous>, transform_indices = @transform_8, window_bounds = array<i64: 1, 16>}, {pipeline_mode = #tpu.pipeline_mode<synchronous>, transform_indices = @transform_9, window_bounds = array<i64: 16, 128>}, {pipeline_mode = #tpu.pipeline_mode<synchronous>, transform_indices = @transform_10, window_bounds = array<i64: 1, 128>}, {transform_indices = @transform_11, window_bounds = array<i64: 8, 128>}]} {
    %c0 = arith.constant 0 : index
    %c0_0 = arith.constant 0 : index
    %0 = vector.load %arg1[%c0, %c0_0] : memref<8x784xf32, #tpu.memory_space<vmem>>, vector<8x784xf32>
    %1 = arith.truncf %0 : vector<8x784xf32> to vector<8x784xbf16>
    %c0_1 = arith.constant 0 : index
    %c0_2 = arith.constant 0 : index
    %2 = vector.load %arg2[%c0_1, %c0_2] : memref<784x128xbf16, #tpu.memory_space<vmem>>, vector<784x128xbf16>
    %cst = arith.constant dense<0.000000e+00> : vector<8x128xf32>
    %3 = tpu.matmul %1, %2, %cst {dimension_numbers = #tpu.dot_dimension_numbers<[1], [0], [0], [1], [0, 0, 1, 1], [], []>} : vector<8x784xbf16>, vector<784x128xbf16>, vector<8x128xf32> -> vector<8x128xf32>
    %c0_3 = arith.constant 0 : index
    %c0_4 = arith.constant 0 : index
    %4 = vector.load %arg3[%c0_3, %c0_4] : memref<1x128xf32, #tpu.memory_space<vmem>>, vector<1x128xf32>
    %5 = vector.broadcast %4 : vector<1x128xf32> to vector<8x128xf32>
    %6 = arith.addf %3, %5 : vector<8x128xf32>
    %cst_5 = arith.constant 0.000000e+00 : f32
    %7 = vector.broadcast %cst_5 : f32 to vector<8x128xf32>
    %8 = arith.cmpf ogt, %6, %7 : vector<8x128xf32>
    %cst_6 = arith.constant 0.00999999977 : f32
    %9 = vector.broadcast %cst_6 : f32 to vector<8x128xf32>
    %10 = arith.mulf %9, %6 : vector<8x128xf32>
    %11 = arith.select %8, %6, %10 : vector<8x128xi1>, vector<8x128xf32>
    %12 = arith.truncf %11 : vector<8x128xf32> to vector<8x128xbf16>
    %c0_7 = arith.constant 0 : index
    %c0_8 = arith.constant 0 : index
    %13 = vector.load %arg4[%c0_7, %c0_8] : memref<128x64xbf16, #tpu.memory_space<vmem>>, vector<128x64xbf16>
    %cst_9 = arith.constant dense<0.000000e+00> : vector<8x64xf32>
    %14 = tpu.matmul %12, %13, %cst_9 {dimension_numbers = #tpu.dot_dimension_numbers<[1], [0], [0], [1], [0, 0, 1, 1], [], []>} : vector<8x128xbf16>, vector<128x64xbf16>, vector<8x64xf32> -> vector<8x64xf32>
    %c0_10 = arith.constant 0 : index
    %c0_11 = arith.constant 0 : index
    %15 = vector.load %arg5[%c0_10, %c0_11] : memref<1x64xf32, #tpu.memory_space<vmem>>, vector<1x64xf32>
    %16 = vector.broadcast %15 : vector<1x64xf32> to vector<8x64xf32>
    %17 = arith.addf %14, %16 : vector<8x64xf32>
    %cst_12 = arith.constant 0.000000e+00 : f32
    %18 = vector.broadcast %cst_12 : f32 to vector<8x64xf32>
    %19 = arith.cmpf ogt, %17, %18 : vector<8x64xf32>
    %cst_13 = arith.constant 0.00999999977 : f32
    %20 = vector.broadcast %cst_13 : f32 to vector<8x64xf32>
    %21 = arith.mulf %20, %17 : vector<8x64xf32>
    %22 = arith.select %19, %17, %21 : vector<8x64xi1>, vector<8x64xf32>
    %23 = arith.truncf %22 : vector<8x64xf32> to vector<8x64xbf16>
    %c0_14 = arith.constant 0 : index
    %c0_15 = arith.constant 0 : index
    %24 = vector.load %arg6[%c0_14, %c0_15] : memref<64x32xbf16, #tpu.memory_space<vmem>>, vector<64x32xbf16>
    %cst_16 = arith.constant dense<0.000000e+00> : vector<8x32xf32>
    %25 = tpu.matmul %23, %24, %cst_16 {dimension_numbers = #tpu.dot_dimension_numbers<[1], [0], [0], [1], [0, 0, 1, 1], [], []>} : vector<8x64xbf16>, vector<64x32xbf16>, vector<8x32xf32> -> vector<8x32xf32>
    %c0_17 = arith.constant 0 : index
    %c0_18 = arith.constant 0 : index
    %26 = vector.load %arg7[%c0_17, %c0_18] : memref<1x32xf32, #tpu.memory_space<vmem>>, vector<1x32xf32>
    %27 = vector.broadcast %26 : vector<1x32xf32> to vector<8x32xf32>
    %28 = arith.addf %25, %27 : vector<8x32xf32>
    %cst_19 = arith.constant 0.000000e+00 : f32
    %29 = vector.broadcast %cst_19 : f32 to vector<8x32xf32>
    %30 = arith.cmpf ogt, %28, %29 : vector<8x32xf32>
    %cst_20 = arith.constant 0.00999999977 : f32
    %31 = vector.broadcast %cst_20 : f32 to vector<8x32xf32>
    %32 = arith.mulf %31, %28 : vector<8x32xf32>
    %33 = arith.select %30, %28, %32 : vector<8x32xi1>, vector<8x32xf32>
    %34 = arith.truncf %33 : vector<8x32xf32> to vector<8x32xbf16>
    %c0_21 = arith.constant 0 : index
    %c0_22 = arith.constant 0 : index
    %35 = vector.load %arg8[%c0_21, %c0_22] : memref<32x16xbf16, #tpu.memory_space<vmem>>, vector<32x16xbf16>
    %cst_23 = arith.constant dense<0.000000e+00> : vector<8x16xf32>
    %36 = tpu.matmul %34, %35, %cst_23 {dimension_numbers = #tpu.dot_dimension_numbers<[1], [0], [0], [1], [0, 0, 1, 1], [], []>} : vector<8x32xbf16>, vector<32x16xbf16>, vector<8x16xf32> -> vector<8x16xf32>
    %c0_24 = arith.constant 0 : index
    %c0_25 = arith.constant 0 : index
    %37 = vector.load %arg9[%c0_24, %c0_25] : memref<1x16xf32, #tpu.memory_space<vmem>>, vector<1x16xf32>
    %38 = vector.broadcast %37 : vector<1x16xf32> to vector<8x16xf32>
    %39 = arith.addf %36, %38 : vector<8x16xf32>
    %cst_26 = arith.constant 0.000000e+00 : f32
    %40 = vector.broadcast %cst_26 : f32 to vector<8x16xf32>
    %41 = arith.cmpf ogt, %39, %40 : vector<8x16xf32>
    %cst_27 = arith.constant 0.00999999977 : f32
    %42 = vector.broadcast %cst_27 : f32 to vector<8x16xf32>
    %43 = arith.mulf %42, %39 : vector<8x16xf32>
    %44 = arith.select %41, %39, %43 : vector<8x16xi1>, vector<8x16xf32>
    %45 = arith.truncf %44 : vector<8x16xf32> to vector<8x16xbf16>
    %c0_28 = arith.constant 0 : index
    %c0_29 = arith.constant 0 : index
    %46 = vector.load %arg10[%c0_28, %c0_29] : memref<16x128xbf16, #tpu.memory_space<vmem>>, vector<16x128xbf16>
    %cst_30 = arith.constant dense<0.000000e+00> : vector<8x128xf32>
    %47 = tpu.matmul %45, %46, %cst_30 {dimension_numbers = #tpu.dot_dimension_numbers<[1], [0], [0], [1], [0, 0, 1, 1], [], []>} : vector<8x16xbf16>, vector<16x128xbf16>, vector<8x128xf32> -> vector<8x128xf32>
    %c0_31 = arith.constant 0 : index
    %c0_32 = arith.constant 0 : index
    %48 = vector.load %arg11[%c0_31, %c0_32] : memref<1x128xf32, #tpu.memory_space<vmem>>, vector<1x128xf32>
    %49 = vector.broadcast %48 : vector<1x128xf32> to vector<8x128xf32>
    %50 = arith.addf %47, %49 : vector<8x128xf32>
    %51 = arith.negf %50 : vector<8x128xf32>
    %52 = math.exp %51 : vector<8x128xf32>
    %cst_33 = arith.constant 1.000000e+00 : f32
    %53 = vector.broadcast %cst_33 : f32 to vector<8x128xf32>
    %54 = arith.addf %53, %52 : vector<8x128xf32>
    %55 = arith.divf %53, %54 : vector<8x128xf32>
    %c0_34 = arith.constant 0 : index
    %c0_35 = arith.constant 0 : index
    %56 = vector.load %arg12[%c0_34, %c0_35] : memref<8x128xf32, #tpu.memory_space<vmem>>, vector<8x128xf32>
    tpu.vector_store %arg12[%c0_34, %c0_35], %55 {strides = array<i32>} : memref<8x128xf32, #tpu.memory_space<vmem>>, vector<8x128xf32>,
    return
  }
  func.func @transform_0(%arg0: i32) -> (i32, i32) {
    %c0_i32 = arith.constant 0 : i32
    %c0_i32_0 = arith.constant 0 : i32
    return %arg0, %c0_i32 : i32, i32
  }
  func.func @transform_1(%arg0: i32) -> (i32, i32) {
    %c0_i32 = arith.constant 0 : i32
    %c0_i32_0 = arith.constant 0 : i32
    %c0_i32_1 = arith.constant 0 : i32
    return %c0_i32, %c0_i32_0 : i32, i32
  }
  func.func @transform_2(%arg0: i32) -> (i32, i32) {
    %c0_i32 = arith.constant 0 : i32
    %c0_i32_0 = arith.constant 0 : i32
    %c0_i32_1 = arith.constant 0 : i32
    return %c0_i32, %c0_i32_0 : i32, i32
  }
  func.func @transform_3(%arg0: i32) -> (i32, i32) {
    %c0_i32 = arith.constant 0 : i32
    %c0_i32_0 = arith.constant 0 : i32
    %c0_i32_1 = arith.constant 0 : i32
    return %c0_i32, %c0_i32_0 : i32, i32
  }
  func.func @transform_4(%arg0: i32) -> (i32, i32) {
    %c0_i32 = arith.constant 0 : i32
    %c0_i32_0 = arith.constant 0 : i32
    %c0_i32_1 = arith.constant 0 : i32
    return %c0_i32, %c0_i32_0 : i32, i32
  }
  func.func @transform_5(%arg0: i32) -> (i32, i32) {
    %c0_i32 = arith.constant 0 : i32
    %c0_i32_0 = arith.constant 0 : i32
    %c0_i32_1 = arith.constant 0 : i32
    return %c0_i32, %c0_i32_0 : i32, i32
  }
  func.func @transform_6(%arg0: i32) -> (i32, i32) {
    %c0_i32 = arith.constant 0 : i32
    %c0_i32_0 = arith.constant 0 : i32
    %c0_i32_1 = arith.constant 0 : i32
    return %c0_i32, %c0_i32_0 : i32, i32
  }
  func.func @transform_7(%arg0: i32) -> (i32, i32) {
    %c0_i32 = arith.constant 0 : i32
    %c0_i32_0 = arith.constant 0 : i32
    %c0_i32_1 = arith.constant 0 : i32
    return %c0_i32, %c0_i32_0 : i32, i32
  }
  func.func @transform_8(%arg0: i32) -> (i32, i32) {
    %c0_i32 = arith.constant 0 : i32
    %c0_i32_0 = arith.constant 0 : i32
    %c0_i32_1 = arith.constant 0 : i32
    return %c0_i32, %c0_i32_0 : i32, i32
  }
  func.func @transform_9(%arg0: i32) -> (i32, i32) {
    %c0_i32 = arith.constant 0 : i32
    %c0_i32_0 = arith.constant 0 : i32
    %c0_i32_1 = arith.constant 0 : i32
    return %c0_i32, %c0_i32_0 : i32, i32
  }
  func.func @transform_10(%arg0: i32) -> (i32, i32) {
    %c0_i32 = arith.constant 0 : i32
    %c0_i32_0 = arith.constant 0 : i32
    %c0_i32_1 = arith.constant 0 : i32
    return %c0_i32, %c0_i32_0 : i32, i32
  }
  func.func @transform_11(%arg0: i32) -> (i32, i32) {
    %c0_i32 = arith.constant 0 : i32
    %c0_i32_0 = arith.constant 0 : i32
    return %arg0, %c0_i32 : i32, i32
  }
}

</mosaic_0001>

<llo_original>
// kernel: mnist_classifier_forward.1
$region0: #{mnist_classifier_forward.1}
  #allocation0 [shape = 'u32[]', space=smem, size = 0x4, offset = 0x4, fixed_abs, tag = 'smem constant byte address 0x4 - core index']
  #allocation1 [shape = 'u32[144,128]{1,0:T(1,128)}', space=vmem, size = 0x12000, scoped, tag = 'internal scratch']
  %s0 = inlined_call_operand.vmem [shape: f32[8,784], index: 0, kind: input, shape index: {}]
  %s1 = inlined_call_operand.vmem [shape: bf16[784,128], index: 1, kind: input, shape index: {}]
  %s2 = inlined_call_operand.vmem [shape: f32[1,128], index: 2, kind: input, shape index: {}]
  %s3 = inlined_call_operand.vmem [shape: bf16[128,64], index: 3, kind: input, shape index: {}]
  %s4 = inlined_call_operand.vmem [shape: f32[1,64], index: 4, kind: input, shape index: {}]
  %s5 = inlined_call_operand.vmem [shape: bf16[64,32], index: 5, kind: input, shape index: {}]
  %s6 = inlined_call_operand.vmem [shape: f32[1,32], index: 6, kind: input, shape index: {}]
  %s7 = inlined_call_operand.vmem [shape: bf16[32,16], index: 7, kind: input, shape index: {}]
  %s8 = inlined_call_operand.vmem [shape: f32[1,16], index: 8, kind: input, shape index: {}]
  %s9 = inlined_call_operand.vmem [shape: bf16[16,128], index: 9, kind: input, shape index: {}]
  %s10 = inlined_call_operand.vmem [shape: f32[1,128], index: 10, kind: input, shape index: {}]
  %s11 = inlined_call_operand.hbm [shape: f32[8,128], index: 11, kind: output, shape index: {}]
  %s12 = sld [smem:[#allocation0]]
  $region54: #{mnist_classifier_forward.1} parent=0
    _
  %s14 = ssub.s32 1, %s12
  %s15 = scalar_select 0, %s14, %s12
  $region1: #{mnist_classifier_forward.1} parent=0
    #allocation2 [shape = 'u8[4096]{0}', space=vmem, size = 0x1000, scoped, tag = 'output window, operand 0, single buffered']
    #allocation3 [shape = 's32[1]{0}', space=sflag, size = 0x4, scoped, tag = 'scoped memory for mnist_classifier_forward.1']
    %16 = vsyncpa [#allocation3], 0
    // Predicated region
    $region2: #{mnist_classifier_forward.1} parent=1 // pred_check
      _
    $region3: #{mnist_classifier_forward.1} parent=1 // pred_check_branch
      %18 = sbr.rel (0) target = $region5
    $region4: #{mnist_classifier_forward.1} parent=1 // pred_region
      _
    $region5: #{mnist_classifier_forward.1} parent=1 // pred_fallthru
      _
    // Predicated region
    $region6: #{mnist_classifier_forward.1} parent=1 // pred_check
      _
    $region7: #{mnist_classifier_forward.1} parent=1 // pred_check_branch
      %20 = sbr.rel (0) target = $region9
    $region8: #{mnist_classifier_forward.1} parent=1 // pred_region
      _
    $region9: #{mnist_classifier_forward.1} parent=1 // pred_fallthru
      _
    // Predicated region
    $region10: #{mnist_classifier_forward.1} parent=1 // pred_check
      _
    $region11: #{mnist_classifier_forward.1} parent=1 // pred_check_branch
      %22 = sbr.rel (0) target = $region13
    $region12: #{mnist_classifier_forward.1} parent=1 // pred_region
      _
    $region13: #{mnist_classifier_forward.1} parent=1 // pred_fallthru
      _
    // Predicated region
    $region14: #{mnist_classifier_forward.1} parent=1 // pred_check
      _
    $region15: #{mnist_classifier_forward.1} parent=1 // pred_check_branch
      %24 = sbr.rel (0) target = $region17
    $region16: #{mnist_classifier_forward.1} parent=1 // pred_region
      _
    $region17: #{mnist_classifier_forward.1} parent=1 // pred_fallthru
      _
    // Predicated region
    $region18: #{mnist_classifier_forward.1} parent=1 // pred_check
      _
    $region19: #{mnist_classifier_forward.1} parent=1 // pred_check_branch
      %26 = sbr.rel (0) target = $region21
    $region20: #{mnist_classifier_forward.1} parent=1 // pred_region
      _
    $region21: #{mnist_classifier_forward.1} parent=1 // pred_fallthru
      _
    // Predicated region
    $region22: #{mnist_classifier_forward.1} parent=1 // pred_check
      _
    $region23: #{mnist_classifier_forward.1} parent=1 // pred_check_branch
      %28 = sbr.rel (0) target = $region25
    $region24: #{mnist_classifier_forward.1} parent=1 // pred_region
      _
    $region25: #{mnist_classifier_forward.1} parent=1 // pred_fallthru
      _
    // Predicated region
    $region26: #{mnist_classifier_forward.1} parent=1 // pred_check
      _
    $region27: #{mnist_classifier_forward.1} parent=1 // pred_check_branch
      %30 = sbr.rel (0) target = $region29
    $region28: #{mnist_classifier_forward.1} parent=1 // pred_region
      _
    $region29: #{mnist_classifier_forward.1} parent=1 // pred_fallthru
      _
    // Predicated region
    $region30: #{mnist_classifier_forward.1} parent=1 // pred_check
      _
    $region31: #{mnist_classifier_forward.1} parent=1 // pred_check_branch
      %32 = sbr.rel (0) target = $region33
    $region32: #{mnist_classifier_forward.1} parent=1 // pred_region
      _
    $region33: #{mnist_classifier_forward.1} parent=1 // pred_fallthru
      _
    // Predicated region
    $region34: #{mnist_classifier_forward.1} parent=1 // pred_check
      _
    $region35: #{mnist_classifier_forward.1} parent=1 // pred_check_branch
      %34 = sbr.rel (0) target = $region37
    $region36: #{mnist_classifier_forward.1} parent=1 // pred_region
      _
    $region37: #{mnist_classifier_forward.1} parent=1 // pred_fallthru
      _
    // Predicated region
    $region38: #{mnist_classifier_forward.1} parent=1 // pred_check
      _
    $region39: #{mnist_classifier_forward.1} parent=1 // pred_check_branch
      %36 = sbr.rel (0) target = $region41
    $region40: #{mnist_classifier_forward.1} parent=1 // pred_region
      _
    $region41: #{mnist_classifier_forward.1} parent=1 // pred_fallthru
      _
    // Predicated region
    $region42: #{mnist_classifier_forward.1} parent=1 // pred_check
      _
    $region43: #{mnist_classifier_forward.1} parent=1 // pred_check_branch
      %38 = sbr.rel (0) target = $region45
    $region44: #{mnist_classifier_forward.1} parent=1 // pred_region
      _
    $region45: #{mnist_classifier_forward.1} parent=1 // pred_fallthru
      _
    %v40 = vld [vmem:[%s0] sm:$0xff]
    %v41 = vld [vmem:[%s0 + $0x8] sm:$0xff]
    %v42 = vld [vmem:[%s0 + $0x10] sm:$0xff]
    %v43 = vld [vmem:[%s0 + $0x18] sm:$0xff]
    %v44 = vld [vmem:[%s0 + $0x20] sm:$0xff]
    %v45 = vld [vmem:[%s0 + $0x28] sm:$0xff]
    %v46 = vld [vmem:[%s0 + $0x30] sm:$0xff]
    %v47 = vpack.c.bf16 %v40, %v40
    %v48 = vpack.c.bf16 %v41, %v41
    %v49 = vpack.c.bf16 %v42, %v42
    %v50 = vpack.c.bf16 %v43, %v43
    %v51 = vpack.c.bf16 %v44, %v44
    %v52 = vpack.c.bf16 %v45, %v45
    %v53 = vpack.c.bf16 %v46, %v46
    %v54 = vld [vmem:[%s1] sm:$0xf]
    %v55 = vld [vmem:[%s1 + $0x4] sm:$0xf]
    %v56 = vld [vmem:[%s1 + $0x8] sm:$0xf]
    %v57 = vld [vmem:[%s1 + $0xc] sm:$0xf]
    %v58 = vld [vmem:[%s1 + $0x10] sm:$0xf]
    %v59 = vld [vmem:[%s1 + $0x14] sm:$0xf]
    %v60 = vld [vmem:[%s1 + $0x18] sm:$0xf]
    %v61 = vld [vmem:[%s1 + $0x1c] sm:$0xf]
    %v62 = vld [vmem:[%s1 + $0x20] sm:$0xf]
    %v63 = vld [vmem:[%s1 + $0x24] sm:$0xf]
    %v64 = vld [vmem:[%s1 + $0x28] sm:$0xf]
    %v65 = vld [vmem:[%s1 + $0x2c] sm:$0xf]
    %v66 = vld [vmem:[%s1 + $0x30] sm:$0xf]
    %v67 = vld [vmem:[%s1 + $0x34] sm:$0xf]
    %v68 = vld [vmem:[%s1 + $0x38] sm:$0xf]
    %v69 = vld [vmem:[%s1 + $0x3c] sm:$0xf]
    %v70 = vld [vmem:[%s1 + $0x40] sm:$0xf]
    %v71 = vld [vmem:[%s1 + $0x44] sm:$0xf]
    %v72 = vld [vmem:[%s1 + $0x48] sm:$0xf]
    %v73 = vld [vmem:[%s1 + $0x4c] sm:$0xf]
    %v74 = vld [vmem:[%s1 + $0x50] sm:$0xf]
    %v75 = vld [vmem:[%s1 + $0x54] sm:$0xf]
    %v76 = vld [vmem:[%s1 + $0x58] sm:$0xf]
    %v77 = vld [vmem:[%s1 + $0x5c] sm:$0xf]
    %v78 = vld [vmem:[%s1 + $0x60] sm:$0xf]
    %v79 = vld [vmem:[%s1 + $0x64] sm:$0xf]
    %v80 = vld [vmem:[%s1 + $0x68] sm:$0xf]
    %v81 = vld [vmem:[%s1 + $0x6c] sm:$0xf]
    %v82 = vld [vmem:[%s1 + $0x70] sm:$0xf]
    %v83 = vld [vmem:[%s1 + $0x74] sm:$0xf]
    %v84 = vld [vmem:[%s1 + $0x78] sm:$0xf]
    %v85 = vld [vmem:[%s1 + $0x7c] sm:$0xf]
    %v86 = vld [vmem:[%s1 + $0x80] sm:$0xf]
    %v87 = vld [vmem:[%s1 + $0x84] sm:$0xf]
    %v88 = vld [vmem:[%s1 + $0x88] sm:$0xf]
    %v89 = vld [vmem:[%s1 + $0x8c] sm:$0xf]
    %v90 = vld [vmem:[%s1 + $0x90] sm:$0xf]
    %v91 = vld [vmem:[%s1 + $0x94] sm:$0xf]
    %v92 = vld [vmem:[%s1 + $0x98] sm:$0xf]
    %v93 = vld [vmem:[%s1 + $0x9c] sm:$0xf]
    %v94 = vld [vmem:[%s1 + $0xa0] sm:$0xf]
    %v95 = vld [vmem:[%s1 + $0xa4] sm:$0xf]
    %v96 = vld [vmem:[%s1 + $0xa8] sm:$0xf]
    %v97 = vld [vmem:[%s1 + $0xac] sm:$0xf]
    %v98 = vld [vmem:[%s1 + $0xb0] sm:$0xf]
    %v99 = vld [vmem:[%s1 + $0xb4] sm:$0xf]
    %v100 = vld [vmem:[%s1 + $0xb8] sm:$0xf]
    %v101 = vld [vmem:[%s1 + $0xbc] sm:$0xf]
    %v102 = vld [vmem:[%s1 + $0xc0] sm:$0xf]
    %v103 = vld [vmem:[%s1 + $0xc4] sm:$0xf]
    %v104 = vld [vmem:[%s1 + $0xc8] sm:$0xf]
    %v105 = vld [vmem:[%s1 + $0xcc] sm:$0xf]
    %v106 = vld [vmem:[%s1 + $0xd0] sm:$0xf]
    %v107 = vld [vmem:[%s1 + $0xd4] sm:$0xf]
    %v108 = vld [vmem:[%s1 + $0xd8] sm:$0xf]
    %v109 = vld [vmem:[%s1 + $0xdc] sm:$0xf]
    %v110 = vld [vmem:[%s1 + $0xe0] sm:$0xf]
    %v111 = vld [vmem:[%s1 + $0xe4] sm:$0xf]
    %v112 = vld [vmem:[%s1 + $0xe8] sm:$0xf]
    %v113 = vld [vmem:[%s1 + $0xec] sm:$0xf]
    %v114 = vld [vmem:[%s1 + $0xf0] sm:$0xf]
    %v115 = vld [vmem:[%s1 + $0xf4] sm:$0xf]
    %v116 = vld [vmem:[%s1 + $0xf8] sm:$0xf]
    %v117 = vld [vmem:[%s1 + $0xfc] sm:$0xf]
    %v118 = vld [vmem:[%s1 + $0x100] sm:$0xf]
    %v119 = vld [vmem:[%s1 + $0x104] sm:$0xf]
    %v120 = vld [vmem:[%s1 + $0x108] sm:$0xf]
    %v121 = vld [vmem:[%s1 + $0x10c] sm:$0xf]
    %v122 = vld [vmem:[%s1 + $0x110] sm:$0xf]
    %v123 = vld [vmem:[%s1 + $0x114] sm:$0xf]
    %v124 = vld [vmem:[%s1 + $0x118] sm:$0xf]
    %v125 = vld [vmem:[%s1 + $0x11c] sm:$0xf]
    %v126 = vld [vmem:[%s1 + $0x120] sm:$0xf]
    %v127 = vld [vmem:[%s1 + $0x124] sm:$0xf]
    %v128 = vld [vmem:[%s1 + $0x128] sm:$0xf]
    %v129 = vld [vmem:[%s1 + $0x12c] sm:$0xf]
    %v130 = vld [vmem:[%s1 + $0x130] sm:$0xf]
    %v131 = vld [vmem:[%s1 + $0x134] sm:$0xf]
    %v132 = vld [vmem:[%s1 + $0x138] sm:$0xf]
    %v133 = vld [vmem:[%s1 + $0x13c] sm:$0xf]
    %v134 = vld [vmem:[%s1 + $0x140] sm:$0xf]
    %v135 = vld [vmem:[%s1 + $0x144] sm:$0xf]
    %v136 = vld [vmem:[%s1 + $0x148] sm:$0xf]
    %v137 = vld [vmem:[%s1 + $0x14c] sm:$0xf]
    %v138 = vld [vmem:[%s1 + $0x150] sm:$0xf]
    %v139 = vld [vmem:[%s1 + $0x154] sm:$0xf]
    %v140 = vld [vmem:[%s1 + $0x158] sm:$0xf]
    %v141 = vld [vmem:[%s1 + $0x15c] sm:$0xf]
    %v142 = vld [vmem:[%s1 + $0x160] sm:$0xf]
    %v143 = vld [vmem:[%s1 + $0x164] sm:$0xf]
    %v144 = vld [vmem:[%s1 + $0x168] sm:$0xf]
    %v145 = vld [vmem:[%s1 + $0x16c] sm:$0xf]
    %v146 = vld [vmem:[%s1 + $0x170] sm:$0xf]
    %v147 = vld [vmem:[%s1 + $0x174] sm:$0xf]
    %v148 = vld [vmem:[%s1 + $0x178] sm:$0xf]
    %v149 = vld [vmem:[%s1 + $0x17c] sm:$0xf]
    %v150 = vld [vmem:[%s1 + $0x180] sm:$0xf]
    %v151 = vld [vmem:[%s1 + $0x184] sm:$0xf]
    %v152 = vld [vmem:[%s2] sm:$0x1]
    %v154 = vlaneseq
    %v155 = vshrl.u32 %v154, 7
    %v156 = vsub.s32 0, %v155
    %v157 = vrot.slane %v152, %v156
    %v257 = vunpack.c.l.b16 %v54
    %v258 = vunpack.c.l.b16 %v55
    %v259 = vunpack.c.l.b16 %v56
    %v260 = vunpack.c.l.b16 %v57
    %v261 = vunpack.c.l.b16 %v58
    %v262 = vunpack.c.l.b16 %v59
    %v263 = vunpack.c.l.b16 %v60
    %v264 = vunpack.c.l.b16 %v61
    %v265 = vunpack.c.l.b16 %v62
    %v266 = vunpack.c.l.b16 %v63
    %v267 = vunpack.c.l.b16 %v64
    %v268 = vunpack.c.l.b16 %v65
    %v269 = vunpack.c.l.b16 %v66
    %v270 = vunpack.c.l.b16 %v67
    %v271 = vunpack.c.l.b16 %v68
    %v272 = vunpack.c.l.b16 %v69
    %v273 = vunpack.c.l.b16 %v70
    %v274 = vunpack.c.l.b16 %v71
    %v275 = vunpack.c.l.b16 %v72
    %v276 = vunpack.c.l.b16 %v73
    %v277 = vunpack.c.l.b16 %v74
    %v278 = vunpack.c.l.b16 %v75
    %v279 = vunpack.c.l.b16 %v76
    %v280 = vunpack.c.l.b16 %v77
    %v281 = vunpack.c.l.b16 %v78
    %v282 = vunpack.c.l.b16 %v79
    %v283 = vunpack.c.l.b16 %v80
    %v284 = vunpack.c.l.b16 %v81
    %v285 = vunpack.c.l.b16 %v82
    %v286 = vunpack.c.l.b16 %v83
    %v287 = vunpack.c.l.b16 %v84
    %v288 = vunpack.c.l.b16 %v85
    %v289 = vunpack.c.l.b16 %v86
    %v290 = vunpack.c.l.b16 %v87
    %v291 = vunpack.c.l.b16 %v88
    %v292 = vunpack.c.l.b16 %v89
    %v293 = vunpack.c.l.b16 %v90
    %v294 = vunpack.c.l.b16 %v91
    %v295 = vunpack.c.l.b16 %v92
    %v296 = vunpack.c.l.b16 %v93
    %v297 = vunpack.c.l.b16 %v94
    %v298 = vunpack.c.l.b16 %v95
    %v299 = vunpack.c.l.b16 %v96
    %v300 = vunpack.c.l.b16 %v97
    %v301 = vunpack.c.l.b16 %v98
    %v302 = vunpack.c.l.b16 %v99
    %v303 = vunpack.c.l.b16 %v100
    %v304 = vunpack.c.l.b16 %v101
    %v305 = vunpack.c.l.b16 %v102
    %v306 = vunpack.c.l.b16 %v103
    %v307 = vunpack.c.l.b16 %v104
    %v308 = vunpack.c.l.b16 %v105
    %v309 = vunpack.c.l.b16 %v106
    %v310 = vunpack.c.l.b16 %v107
    %v311 = vunpack.c.l.b16 %v108
    %v312 = vunpack.c.l.b16 %v109
    %v313 = vunpack.c.l.b16 %v110
    %v314 = vunpack.c.l.b16 %v111
    %v315 = vunpack.c.l.b16 %v112
    %v316 = vunpack.c.l.b16 %v113
    %v317 = vunpack.c.l.b16 %v114
    %v318 = vunpack.c.l.b16 %v115
    %v319 = vunpack.c.l.b16 %v116
    %v320 = vunpack.c.l.b16 %v117
    %v321 = vunpack.c.l.b16 %v118
    %v322 = vunpack.c.l.b16 %v119
    %v323 = vunpack.c.l.b16 %v120
    %v324 = vunpack.c.l.b16 %v121
    %v325 = vunpack.c.l.b16 %v122
    %v326 = vunpack.c.l.b16 %v123
    %v327 = vunpack.c.l.b16 %v124
    %v328 = vunpack.c.l.b16 %v125
    %v329 = vunpack.c.l.b16 %v126
    %v330 = vunpack.c.l.b16 %v127
    %v331 = vunpack.c.l.b16 %v128
    %v332 = vunpack.c.l.b16 %v129
    %v333 = vunpack.c.l.b16 %v130
    %v334 = vunpack.c.l.b16 %v131
    %v335 = vunpack.c.l.b16 %v132
    %v336 = vunpack.c.l.b16 %v133
    %v337 = vunpack.c.l.b16 %v134
    %v338 = vunpack.c.l.b16 %v135
    %v339 = vunpack.c.l.b16 %v136
    %v340 = vunpack.c.l.b16 %v137
    %v341 = vunpack.c.l.b16 %v138
    %v342 = vunpack.c.l.b16 %v139
    %v343 = vunpack.c.l.b16 %v140
    %v344 = vunpack.c.l.b16 %v141
    %v345 = vunpack.c.l.b16 %v142
    %v346 = vunpack.c.l.b16 %v143
    %v347 = vunpack.c.l.b16 %v144
    %v348 = vunpack.c.l.b16 %v145
    %v349 = vunpack.c.l.b16 %v146
    %v350 = vunpack.c.l.b16 %v147
    %v351 = vunpack.c.l.b16 %v148
    %v352 = vunpack.c.l.b16 %v149
    %v353 = vunpack.c.l.b16 %v150
    %v354 = vunpack.c.l.b16 %v151
    %v355 = vpack.c.b16 %v258, %v257
    %v356 = vpack.c.b16 %v260, %v259
    %v357 = vpack.c.b16 %v262, %v261
    %v358 = vpack.c.b16 %v264, %v263
    %v359 = vpack.c.b16 %v266, %v265
    %v360 = vpack.c.b16 %v268, %v267
    %v361 = vpack.c.b16 %v270, %v269
    %v362 = vpack.c.b16 %v272, %v271
    %v363 = vpack.c.b16 %v274, %v273
    %v364 = vpack.c.b16 %v276, %v275
    %v365 = vpack.c.b16 %v278, %v277
    %v366 = vpack.c.b16 %v280, %v279
    %v367 = vpack.c.b16 %v282, %v281
    %v368 = vpack.c.b16 %v284, %v283
    %v369 = vpack.c.b16 %v286, %v285
    %v370 = vpack.c.b16 %v288, %v287
    %v371 = vpack.c.b16 %v290, %v289
    %v372 = vpack.c.b16 %v292, %v291
    %v373 = vpack.c.b16 %v294, %v293
    %v374 = vpack.c.b16 %v296, %v295
    %v375 = vpack.c.b16 %v298, %v297
    %v376 = vpack.c.b16 %v300, %v299
    %v377 = vpack.c.b16 %v302, %v301
    %v378 = vpack.c.b16 %v304, %v303
    %v379 = vpack.c.b16 %v306, %v305
    %v380 = vpack.c.b16 %v308, %v307
    %v381 = vpack.c.b16 %v310, %v309
    %v382 = vpack.c.b16 %v312, %v311
    %v383 = vpack.c.b16 %v314, %v313
    %v384 = vpack.c.b16 %v316, %v315
    %v385 = vpack.c.b16 %v318, %v317
    %v386 = vpack.c.b16 %v320, %v319
    %v387 = vpack.c.b16 %v322, %v321
    %v388 = vpack.c.b16 %v324, %v323
    %v389 = vpack.c.b16 %v326, %v325
    %v390 = vpack.c.b16 %v328, %v327
    %v391 = vpack.c.b16 %v330, %v329
    %v392 = vpack.c.b16 %v332, %v331
    %v393 = vpack.c.b16 %v334, %v333
    %v394 = vpack.c.b16 %v336, %v335
    %v395 = vpack.c.b16 %v338, %v337
    %v396 = vpack.c.b16 %v340, %v339
    %v397 = vpack.c.b16 %v342, %v341
    %v398 = vpack.c.b16 %v344, %v343
    %v399 = vpack.c.b16 %v346, %v345
    %v400 = vpack.c.b16 %v348, %v347
    %v401 = vpack.c.b16 %v350, %v349
    %v402 = vpack.c.b16 %v352, %v351
    %v403 = vpack.c.b16 %v354, %v353
    %vm453 = vcmask 130048
    %v455 = vsel %vm453, %v53, 0
    %457 = vmatprep.subr.bf16.mxu0 0
    %458 = vmatpush1.bf16.msra.mxu0 %v362
    %459 = vmatprep.subr.bf16.mxu0 0
    %460 = vmatpush1.bf16.msra.mxu0 %v361
    %461 = vmatprep.subr.bf16.mxu0 0
    %462 = vmatpush1.bf16.msra.mxu0 %v360
    %463 = vmatprep.subr.bf16.mxu0 0
    %464 = vmatpush1.bf16.msra.mxu0 %v359
    %465 = vmatprep.subr.bf16.mxu0 0
    %466 = vmatpush1.bf16.msra.mxu0 %v358
    %467 = vmatprep.subr.bf16.mxu0 0
    %468 = vmatpush1.bf16.msra.mxu0 %v357
    %469 = vmatprep.subr.bf16.mxu0 0
    %470 = vmatpush1.bf16.msra.mxu0 %v356
    %471 = vmatprep.subr.bf16.mxu0 0
    %472 = vmatpush1.bf16.msra.mxu0 %v355
    %473 = vmatprep.subr.bf16.mxu0 0
    %474 = vmatpush2.bf16.msra.mxu0 %v370
    %475 = vmatprep.subr.bf16.mxu0 0
    %476 = vmatpush2.bf16.msra.mxu0 %v369
    %477 = vmatprep.subr.bf16.mxu0 0
    %478 = vmatpush2.bf16.msra.mxu0 %v368
    %479 = vmatprep.subr.bf16.mxu0 0
    %480 = vmatpush2.bf16.msra.mxu0 %v367
    %481 = vmatprep.subr.bf16.mxu0 0
    %482 = vmatpush2.bf16.msra.mxu0 %v366
    %483 = vmatprep.subr.bf16.mxu0 0
    %484 = vmatpush2.bf16.msra.mxu0 %v365
    %485 = vmatprep.subr.bf16.mxu0 0
    %486 = vmatpush2.bf16.msra.mxu0 %v364
    %487 = vmatprep.subr.bf16.mxu0 0
    %488 = vmatpush2.bf16.msra.mxu0 %v363
    %489 = vmatprep.mubr.bf16.mxu0 %v48
    %490 = vmatmul.mubr.bf16.gmra.mxu0 %v47
    %v491 = vpop.f32.mrf.mxu0
    %v492 = vadd.f32 %v157, %v491
    %v493 = vpop.f32.mrf.mxu0
    %v494 = vpop.f32.mrf.mxu0
    %v495 = vpop.f32.mrf.mxu0
    %496 = vdwg.mxu0
    %497 = vmatprep.subr.bf16.mxu0 0
    %498 = vmatpush1.bf16.msra.mxu0 %v378
    %499 = vmatprep.subr.bf16.mxu0 0
    %500 = vmatpush1.bf16.msra.mxu0 %v377
    %501 = vmatprep.subr.bf16.mxu0 0
    %502 = vmatpush1.bf16.msra.mxu0 %v376
    %503 = vmatprep.subr.bf16.mxu0 0
    %504 = vmatpush1.bf16.msra.mxu0 %v375
    %505 = vmatprep.subr.bf16.mxu0 0
    %506 = vmatpush1.bf16.msra.mxu0 %v374
    %507 = vmatprep.subr.bf16.mxu0 0
    %508 = vmatpush1.bf16.msra.mxu0 %v373
    %509 = vmatprep.subr.bf16.mxu0 0
    %510 = vmatpush1.bf16.msra.mxu0 %v372
    %511 = vmatprep.subr.bf16.mxu0 0
    %512 = vmatpush1.bf16.msra.mxu0 %v371
    %513 = vmatprep.subr.bf16.mxu0 0
    %514 = vmatpush2.bf16.msra.mxu0 %v386
    %515 = vmatprep.subr.bf16.mxu0 0
    %516 = vmatpush2.bf16.msra.mxu0 %v385
    %517 = vmatprep.subr.bf16.mxu0 0
    %518 = vmatpush2.bf16.msra.mxu0 %v384
    %519 = vmatprep.subr.bf16.mxu0 0
    %520 = vmatpush2.bf16.msra.mxu0 %v383
    %521 = vmatprep.subr.bf16.mxu0 0
    %522 = vmatpush2.bf16.msra.mxu0 %v382
    %523 = vmatprep.subr.bf16.mxu0 0
    %524 = vmatpush2.bf16.msra.mxu0 %v381
    %525 = vmatprep.subr.bf16.mxu0 0
    %526 = vmatpush2.bf16.msra.mxu0 %v380
    %527 = vmatprep.subr.bf16.mxu0 0
    %528 = vmatpush2.bf16.msra.mxu0 %v379
    %529 = vmatprep.mubr.bf16.mxu0 %v50
    %530 = vmatmul.mubr.bf16.gmra.mxu0 %v49
    %v531 = vpop.f32.mrf.mxu0
    %v532 = vadd.f32 %v492, %v531
    %v533 = vpop.f32.mrf.mxu0
    %v534 = vpop.f32.mrf.mxu0
    %v535 = vpop.f32.mrf.mxu0
    %536 = vdwg.mxu0
    %537 = vmatprep.subr.bf16.mxu0 0
    %538 = vmatpush1.bf16.msra.mxu0 %v394
    %539 = vmatprep.subr.bf16.mxu0 0
    %540 = vmatpush1.bf16.msra.mxu0 %v393
    %541 = vmatprep.subr.bf16.mxu0 0
    %542 = vmatpush1.bf16.msra.mxu0 %v392
    %543 = vmatprep.subr.bf16.mxu0 0
    %544 = vmatpush1.bf16.msra.mxu0 %v391
    %545 = vmatprep.subr.bf16.mxu0 0
    %546 = vmatpush1.bf16.msra.mxu0 %v390
    %547 = vmatprep.subr.bf16.mxu0 0
    %548 = vmatpush1.bf16.msra.mxu0 %v389
    %549 = vmatprep.subr.bf16.mxu0 0
    %550 = vmatpush1.bf16.msra.mxu0 %v388
    %551 = vmatprep.subr.bf16.mxu0 0
    %552 = vmatpush1.bf16.msra.mxu0 %v387
    %553 = vmatprep.subr.bf16.mxu0 0
    %554 = vmatpush2.bf16.msra.mxu0 %v402
    %555 = vmatprep.subr.bf16.mxu0 0
    %556 = vmatpush2.bf16.msra.mxu0 %v401
    %557 = vmatprep.subr.bf16.mxu0 0
    %558 = vmatpush2.bf16.msra.mxu0 %v400
    %559 = vmatprep.subr.bf16.mxu0 0
    %560 = vmatpush2.bf16.msra.mxu0 %v399
    %561 = vmatprep.subr.bf16.mxu0 0
    %562 = vmatpush2.bf16.msra.mxu0 %v398
    %563 = vmatprep.subr.bf16.mxu0 0
    %564 = vmatpush2.bf16.msra.mxu0 %v397
    %565 = vmatprep.subr.bf16.mxu0 0
    %566 = vmatpush2.bf16.msra.mxu0 %v396
    %567 = vmatprep.subr.bf16.mxu0 0
    %568 = vmatpush2.bf16.msra.mxu0 %v395
    %569 = vmatprep.mubr.bf16.mxu0 %v52
    %570 = vmatmul.mubr.bf16.gmra.mxu0 %v51
    %v571 = vpop.f32.mrf.mxu0
    %v572 = vadd.f32 %v532, %v571
    %v573 = vpop.f32.mrf.mxu0
    %v574 = vpop.f32.mrf.mxu0
    %v575 = vpop.f32.mrf.mxu0
    %576 = vdwg.mxu0
    %577 = vmatprep.subr.bf16.mxu0 0
    %578 = vmatpush1.bf16.msra.mxu0 0
    %579 = vmatprep.subr.bf16.mxu0 0
    %580 = vmatpush1.bf16.msra.mxu0 0
    %581 = vmatprep.subr.bf16.mxu0 0
    %582 = vmatpush1.bf16.msra.mxu0 0
    %583 = vmatprep.subr.bf16.mxu0 0
    %584 = vmatpush1.bf16.msra.mxu0 0
    %585 = vmatprep.subr.bf16.mxu0 0
    %586 = vmatpush1.bf16.msra.mxu0 0
    %587 = vmatprep.subr.bf16.mxu0 0
    %588 = vmatpush1.bf16.msra.mxu0 0
    %589 = vmatprep.subr.bf16.mxu0 0
    %590 = vmatpush1.bf16.msra.mxu0 0
    %591 = vmatprep.subr.bf16.mxu0 0
    %592 = vmatpush1.bf16.msra.mxu0 %v403
    %593 = vmatprep.subr.bf16.mxu0 0
    %594 = vmatpush2.bf16.msra.mxu0 0
    %595 = vmatprep.subr.bf16.mxu0 0
    %596 = vmatpush2.bf16.msra.mxu0 0
    %597 = vmatprep.subr.bf16.mxu0 0
    %598 = vmatpush2.bf16.msra.mxu0 0
    %599 = vmatprep.subr.bf16.mxu0 0
    %600 = vmatpush2.bf16.msra.mxu0 0
    %601 = vmatprep.subr.bf16.mxu0 0
    %602 = vmatpush2.bf16.msra.mxu0 0
    %603 = vmatprep.subr.bf16.mxu0 0
    %604 = vmatpush2.bf16.msra.mxu0 0
    %605 = vmatprep.subr.bf16.mxu0 0
    %606 = vmatpush2.bf16.msra.mxu0 0
    %607 = vmatprep.subr.bf16.mxu0 0
    %608 = vmatpush2.bf16.msra.mxu0 0
    %609 = vmatprep.mubr.bf16.mxu0 0
    %610 = vmatmul.mubr.bf16.gmra.mxu0 %v455
    %v611 = vpop.f32.mrf.mxu0
    %v612 = vadd.f32 %v572, %v611
    %v613 = vpop.f32.mrf.mxu0
    %v614 = vpop.f32.mrf.mxu0
    %v615 = vpop.f32.mrf.mxu0
    %616 = vdwg.mxu0
    %vm617 = vcmp.gt.f32.partialorder %v612, 0.0
    %v618 = vmul.f32 %v612, 0.01
    %v619 = vsel %vm617, %v612, %v618
    %v620 = vpack.c.bf16 %v619, %v619
    %v621 = vld [vmem:[%s3] sm:$0xf]
    %v622 = vld [vmem:[%s3 + $0x4] sm:$0xf]
    %v623 = vld [vmem:[%s3 + $0x8] sm:$0xf]
    %v624 = vld [vmem:[%s3 + $0xc] sm:$0xf]
    %v625 = vld [vmem:[%s3 + $0x10] sm:$0xf]
    %v626 = vld [vmem:[%s3 + $0x14] sm:$0xf]
    %v627 = vld [vmem:[%s3 + $0x18] sm:$0xf]
    %v628 = vld [vmem:[%s3 + $0x1c] sm:$0xf]
    %v629 = vld [vmem:[%s3 + $0x20] sm:$0xf]
    %v630 = vld [vmem:[%s3 + $0x24] sm:$0xf]
    %v631 = vld [vmem:[%s3 + $0x28] sm:$0xf]
    %v632 = vld [vmem:[%s3 + $0x2c] sm:$0xf]
    %v633 = vld [vmem:[%s3 + $0x30] sm:$0xf]
    %v634 = vld [vmem:[%s3 + $0x34] sm:$0xf]
    %v635 = vld [vmem:[%s3 + $0x38] sm:$0xf]
    %v636 = vld [vmem:[%s3 + $0x3c] sm:$0xf]
    %v637 = vld [vmem:[%s4] sm:$0x1]
    %v639 = vlaneseq
    %v640 = vshrl.u32 %v639, 7
    %v641 = vsub.s32 0, %v640
    %v642 = vrot.slane %v637, %v641
    %v660 = vunpack.c.l.b16 %v621
    %v661 = vunpack.c.l.b16 %v622
    %v662 = vunpack.c.l.b16 %v623
    %v663 = vunpack.c.l.b16 %v624
    %v664 = vunpack.c.l.b16 %v625
    %v665 = vunpack.c.l.b16 %v626
    %v666 = vunpack.c.l.b16 %v627
    %v667 = vunpack.c.l.b16 %v628
    %v668 = vunpack.c.l.b16 %v629
    %v669 = vunpack.c.l.b16 %v630
    %v670 = vunpack.c.l.b16 %v631
    %v671 = vunpack.c.l.b16 %v632
    %v672 = vunpack.c.l.b16 %v633
    %v673 = vunpack.c.l.b16 %v634
    %v674 = vunpack.c.l.b16 %v635
    %v675 = vunpack.c.l.b16 %v636
    %v676 = vpack.c.b16 %v661, %v660
    %v677 = vpack.c.b16 %v663, %v662
    %v678 = vpack.c.b16 %v665, %v664
    %v679 = vpack.c.b16 %v667, %v666
    %v680 = vpack.c.b16 %v669, %v668
    %v681 = vpack.c.b16 %v671, %v670
    %v682 = vpack.c.b16 %v673, %v672
    %v683 = vpack.c.b16 %v675, %v674
    %692 = vmatprep.subr.bf16.mxu0 0
    %693 = vmatpush1.bf16.msra.mxu0 %v683
    %694 = vmatprep.subr.bf16.mxu0 0
    %695 = vmatpush1.bf16.msra.mxu0 %v682
    %696 = vmatprep.subr.bf16.mxu0 0
    %697 = vmatpush1.bf16.msra.mxu0 %v681
    %698 = vmatprep.subr.bf16.mxu0 0
    %699 = vmatpush1.bf16.msra.mxu0 %v680
    %700 = vmatprep.subr.bf16.mxu0 0
    %701 = vmatpush1.bf16.msra.mxu0 %v679
    %702 = vmatprep.subr.bf16.mxu0 0
    %703 = vmatpush1.bf16.msra.mxu0 %v678
    %704 = vmatprep.subr.bf16.mxu0 0
    %705 = vmatpush1.bf16.msra.mxu0 %v677
    %706 = vmatprep.subr.bf16.mxu0 0
    %707 = vmatpush1.bf16.msra.mxu0 %v676
    %708 = vmatprep.subr.bf16.mxu0 0
    %709 = vmatpush2.bf16.msra.mxu0 0
    %710 = vmatprep.subr.bf16.mxu0 0
    %711 = vmatpush2.bf16.msra.mxu0 0
    %712 = vmatprep.subr.bf16.mxu0 0
    %713 = vmatpush2.bf16.msra.mxu0 0
    %714 = vmatprep.subr.bf16.mxu0 0
    %715 = vmatpush2.bf16.msra.mxu0 0
    %716 = vmatprep.subr.bf16.mxu0 0
    %717 = vmatpush2.bf16.msra.mxu0 0
    %718 = vmatprep.subr.bf16.mxu0 0
    %719 = vmatpush2.bf16.msra.mxu0 0
    %720 = vmatprep.subr.bf16.mxu0 0
    %721 = vmatpush2.bf16.msra.mxu0 0
    %722 = vmatprep.subr.bf16.mxu0 0
    %723 = vmatpush2.bf16.msra.mxu0 0
    %724 = vmatprep.mubr.bf16.mxu0 0
    %725 = vmatmul.mubr.bf16.gmra.mxu0 %v620
    %v726 = vpop.f32.mrf.mxu0
    %v727 = vadd.f32 %v642, %v726
    %v728 = vpop.f32.mrf.mxu0
    %v729 = vpop.f32.mrf.mxu0
    %v730 = vpop.f32.mrf.mxu0
    %731 = vdwg.mxu0
    %vm732 = vcmp.gt.f32.partialorder %v727, 0.0
    %v733 = vmul.f32 %v727, 0.01
    %v734 = vsel %vm732, %v727, %v733
    %v735 = vpack.c.bf16 %v734, %v734
    %v736 = vld [vmem:[%s5] sm:$0xf]
    %v737 = vld [vmem:[%s5 + $0x4] sm:$0xf]
    %v738 = vld [vmem:[%s5 + $0x8] sm:$0xf]
    %v739 = vld [vmem:[%s5 + $0xc] sm:$0xf]
    %v740 = vld [vmem:[%s5 + $0x10] sm:$0xf]
    %v741 = vld [vmem:[%s5 + $0x14] sm:$0xf]
    %v742 = vld [vmem:[%s5 + $0x18] sm:$0xf]
    %v743 = vld [vmem:[%s5 + $0x1c] sm:$0xf]
    %v744 = vld [vmem:[%s6] sm:$0x1]
    %v746 = vlaneseq
    %v747 = vshrl.u32 %v746, 7
    %v748 = vsub.s32 0, %v747
    %v749 = vrot.slane %v744, %v748
    %v759 = vunpack.c.l.b16 %v736
    %v760 = vunpack.c.l.b16 %v737
    %v761 = vunpack.c.l.b16 %v738
    %v762 = vunpack.c.l.b16 %v739
    %v763 = vunpack.c.l.b16 %v740
    %v764 = vunpack.c.l.b16 %v741
    %v765 = vunpack.c.l.b16 %v742
    %v766 = vunpack.c.l.b16 %v743
    %v767 = vpack.c.b16 %v760, %v759
    %v768 = vpack.c.b16 %v762, %v761
    %v769 = vpack.c.b16 %v764, %v763
    %v770 = vpack.c.b16 %v766, %v765
    %vm775 = vcmask 523264
    %v777 = vsel %vm775, %v735, 0
    %779 = vmatprep.subr.bf16.mxu0 0
    %780 = vmatpush1.bf16.msra.mxu0 0
    %781 = vmatprep.subr.bf16.mxu0 0
    %782 = vmatpush1.bf16.msra.mxu0 0
    %783 = vmatprep.subr.bf16.mxu0 0
    %784 = vmatpush1.bf16.msra.mxu0 0
    %785 = vmatprep.subr.bf16.mxu0 0
    %786 = vmatpush1.bf16.msra.mxu0 0
    %787 = vmatprep.subr.bf16.mxu0 0
    %788 = vmatpush1.bf16.msra.mxu0 %v770
    %789 = vmatprep.subr.bf16.mxu0 0
    %790 = vmatpush1.bf16.msra.mxu0 %v769
    %791 = vmatprep.subr.bf16.mxu0 0
    %792 = vmatpush1.bf16.msra.mxu0 %v768
    %793 = vmatprep.subr.bf16.mxu0 0
    %794 = vmatpush1.bf16.msra.mxu0 %v767
    %795 = vmatprep.subr.bf16.mxu0 0
    %796 = vmatpush2.bf16.msra.mxu0 0
    %797 = vmatprep.subr.bf16.mxu0 0
    %798 = vmatpush2.bf16.msra.mxu0 0
    %799 = vmatprep.subr.bf16.mxu0 0
    %800 = vmatpush2.bf16.msra.mxu0 0
    %801 = vmatprep.subr.bf16.mxu0 0
    %802 = vmatpush2.bf16.msra.mxu0 0
    %803 = vmatprep.subr.bf16.mxu0 0
    %804 = vmatpush2.bf16.msra.mxu0 0
    %805 = vmatprep.subr.bf16.mxu0 0
    %806 = vmatpush2.bf16.msra.mxu0 0
    %807 = vmatprep.subr.bf16.mxu0 0
    %808 = vmatpush2.bf16.msra.mxu0 0
    %809 = vmatprep.subr.bf16.mxu0 0
    %810 = vmatpush2.bf16.msra.mxu0 0
    %811 = vmatprep.mubr.bf16.mxu0 0
    %812 = vmatmul.mubr.bf16.gmra.mxu0 %v777
    %v813 = vpop.f32.mrf.mxu0
    %v814 = vadd.f32 %v749, %v813
    %v815 = vpop.f32.mrf.mxu0
    %v816 = vpop.f32.mrf.mxu0
    %v817 = vpop.f32.mrf.mxu0
    %818 = vdwg.mxu0
    %vm819 = vcmp.gt.f32.partialorder %v814, 0.0
    %v820 = vmul.f32 %v814, 0.01
    %v821 = vsel %vm819, %v814, %v820
    %v822 = vpack.c.bf16 %v821, %v821
    %v823 = vld [vmem:[%s7] sm:$0xf]
    %v824 = vld [vmem:[%s7 + $0x4] sm:$0xf]
    %v825 = vld [vmem:[%s7 + $0x8] sm:$0xf]
    %v826 = vld [vmem:[%s7 + $0xc] sm:$0xf]
    %v827 = vld [vmem:[%s8] sm:$0x1]
    %v829 = vlaneseq
    %v830 = vshrl.u32 %v829, 7
    %v831 = vsub.s32 0, %v830
    %v832 = vrot.slane %v827, %v831
    %v838 = vunpack.c.l.b16 %v823
    %v839 = vunpack.c.l.b16 %v824
    %v840 = vunpack.c.l.b16 %v825
    %v841 = vunpack.c.l.b16 %v826
    %v842 = vpack.c.b16 %v839, %v838
    %v843 = vpack.c.b16 %v841, %v840
    %vm846 = vcmask 261120
    %v848 = vsel %vm846, %v822, 0
    %850 = vmatprep.subr.bf16.mxu0 0
    %851 = vmatpush1.bf16.msra.mxu0 0
    %852 = vmatprep.subr.bf16.mxu0 0
    %853 = vmatpush1.bf16.msra.mxu0 0
    %854 = vmatprep.subr.bf16.mxu0 0
    %855 = vmatpush1.bf16.msra.mxu0 0
    %856 = vmatprep.subr.bf16.mxu0 0
    %857 = vmatpush1.bf16.msra.mxu0 0
    %858 = vmatprep.subr.bf16.mxu0 0
    %859 = vmatpush1.bf16.msra.mxu0 0
    %860 = vmatprep.subr.bf16.mxu0 0
    %861 = vmatpush1.bf16.msra.mxu0 0
    %862 = vmatprep.subr.bf16.mxu0 0
    %863 = vmatpush1.bf16.msra.mxu0 %v843
    %864 = vmatprep.subr.bf16.mxu0 0
    %865 = vmatpush1.bf16.msra.mxu0 %v842
    %866 = vmatprep.subr.bf16.mxu0 0
    %867 = vmatpush2.bf16.msra.mxu0 0
    %868 = vmatprep.subr.bf16.mxu0 0
    %869 = vmatpush2.bf16.msra.mxu0 0
    %870 = vmatprep.subr.bf16.mxu0 0
    %871 = vmatpush2.bf16.msra.mxu0 0
    %872 = vmatprep.subr.bf16.mxu0 0
    %873 = vmatpush2.bf16.msra.mxu0 0
    %874 = vmatprep.subr.bf16.mxu0 0
    %875 = vmatpush2.bf16.msra.mxu0 0
    %876 = vmatprep.subr.bf16.mxu0 0
    %877 = vmatpush2.bf16.msra.mxu0 0
    %878 = vmatprep.subr.bf16.mxu0 0
    %879 = vmatpush2.bf16.msra.mxu0 0
    %880 = vmatprep.subr.bf16.mxu0 0
    %881 = vmatpush2.bf16.msra.mxu0 0
    %882 = vmatprep.mubr.bf16.mxu0 0
    %883 = vmatmul.mubr.bf16.gmra.mxu0 %v848
    %v884 = vpop.f32.mrf.mxu0
    %v885 = vadd.f32 %v832, %v884
    %v886 = vpop.f32.mrf.mxu0
    %v887 = vpop.f32.mrf.mxu0
    %v888 = vpop.f32.mrf.mxu0
    %889 = vdwg.mxu0
    %vm890 = vcmp.gt.f32.partialorder %v885, 0.0
    %v891 = vmul.f32 %v885, 0.01
    %v892 = vsel %vm890, %v885, %v891
    %v893 = vpack.c.bf16 %v892, %v892
    %v894 = vld [vmem:[%s9] sm:$0xf]
    %v895 = vld [vmem:[%s9 + $0x4] sm:$0xf]
    %v896 = vld [vmem:[%s10] sm:$0x1]
    %v898 = vlaneseq
    %v899 = vshrl.u32 %v898, 7
    %v900 = vsub.s32 0, %v899
    %v901 = vrot.slane %v896, %v900
    %v905 = vunpack.c.l.b16 %v894
    %v906 = vunpack.c.l.b16 %v895
    %v907 = vpack.c.b16 %v906, %v905
    %v910 = vsel %vm453, %v893, 0
    %912 = vmatprep.subr.bf16.mxu0 0
    %913 = vmatpush1.bf16.msra.mxu0 0
    %914 = vmatprep.subr.bf16.mxu0 0
    %915 = vmatpush1.bf16.msra.mxu0 0
    %916 = vmatprep.subr.bf16.mxu0 0
    %917 = vmatpush1.bf16.msra.mxu0 0
    %918 = vmatprep.subr.bf16.mxu0 0
    %919 = vmatpush1.bf16.msra.mxu0 0
    %920 = vmatprep.subr.bf16.mxu0 0
    %921 = vmatpush1.bf16.msra.mxu0 0
    %922 = vmatprep.subr.bf16.mxu0 0
    %923 = vmatpush1.bf16.msra.mxu0 0
    %924 = vmatprep.subr.bf16.mxu0 0
    %925 = vmatpush1.bf16.msra.mxu0 0
    %926 = vmatprep.subr.bf16.mxu0 0
    %927 = vmatpush1.bf16.msra.mxu0 %v907
    %928 = vmatprep.subr.bf16.mxu0 0
    %929 = vmatpush2.bf16.msra.mxu0 0
    %930 = vmatprep.subr.bf16.mxu0 0
    %931 = vmatpush2.bf16.msra.mxu0 0
    %932 = vmatprep.subr.bf16.mxu0 0
    %933 = vmatpush2.bf16.msra.mxu0 0
    %934 = vmatprep.subr.bf16.mxu0 0
    %935 = vmatpush2.bf16.msra.mxu0 0
    %936 = vmatprep.subr.bf16.mxu0 0
    %937 = vmatpush2.bf16.msra.mxu0 0
    %938 = vmatprep.subr.bf16.mxu0 0
    %939 = vmatpush2.bf16.msra.mxu0 0
    %940 = vmatprep.subr.bf16.mxu0 0
    %941 = vmatpush2.bf16.msra.mxu0 0
    %942 = vmatprep.subr.bf16.mxu0 0
    %943 = vmatpush2.bf16.msra.mxu0 0
    %944 = vmatprep.mubr.bf16.mxu0 0
    %945 = vmatmul.mubr.bf16.gmra.mxu0 %v910
    %v946 = vpop.f32.mrf.mxu0
    %v947 = vadd.f32 %v901, %v946
    %v948 = vpop.f32.mrf.mxu0
    %v949 = vpop.f32.mrf.mxu0
    %v950 = vpop.f32.mrf.mxu0
    %951 = vdwg.mxu0
    %v952 = vxor.u32 %v947, 2147483648
    %v953 = vmul.f32 %v952, 1.442695
    %v954 = vpow.pop %v953
    %v955 = vadd.f32 %v954, 1.0
    %v956 = vrcp.pop %v955
    %v957 = vmul.f32 1.0, %v956
    %958 = vst [vmem:[#allocation2] sm:$0xff] %v957
    // Predicated region
    $region46: #{mnist_classifier_forward.1} parent=1 // pred_check
      _
    $region47: #{mnist_classifier_forward.1} parent=1 // pred_check_branch
      %960 = sbr.rel (0) target = $region49
    $region48: #{mnist_classifier_forward.1} parent=1 // pred_region
      %s962 = ssub.s32 128, 128
      %963 = vsyncadd [#allocation3], %s962
      %s965 = sshll.u32 [#allocation2], 4
      %s966 = int_to_ptr.vmem [resolvable:$true] %s965
      %968 = dma.vmem_to_hbm [thread:$0]  %s966, 128, %s11, [#allocation3]
    $region49: #{mnist_classifier_forward.1} parent=1 // pred_fallthru
      _
    // Predicated region
    $region50: #{mnist_classifier_forward.1} parent=1 // pred_check
      _
    $region51: #{mnist_classifier_forward.1} parent=1 // pred_check_branch
      %970 = sbr.rel (0) target = $region53
    $region52: #{mnist_classifier_forward.1} parent=1 // pred_region
      %971 = dma.done [#allocation3], 128
    $region53: #{mnist_classifier_forward.1} parent=1 // pred_fallthru
      _
    %972 = vsyncpa [#allocation3], 1

</llo_original>
